<compile_context>
chip_gen: v7x
topology: tpu7x:2x2x1
jax: 0.10.0
libtpu: 0.0.40
codegen_flags: <defaults>
</compile_context>

<pallas_src>
import functools

import numpy as np

import jax
import jax.numpy as jnp
from jax.experimental import pallas as pl
from jax.experimental.pallas import tpu as pltpu

K = 5          # blur kernel size
PAD = K // 2   # "same" padding


# ----------------------------------------------------------------------------
# Blur matrices (host-side, cached across calls).
# ----------------------------------------------------------------------------
def _gauss1d_np():
    """Normalized 1-D Gaussian taps; outer(w, w) == the original 2-D kernel."""
    ax = np.arange(K, dtype=np.float64) - PAD
    g = np.exp(-(ax ** 2) / 2.0)
    return (g / g.sum()).astype(np.float32)


def _banded_np(n):
    """(n, n) band M with M[row, col] = w1d[col - row + PAD] inside the band.

    Left-multiplying by M applies the 1-D blur (zero "same" padding implicit)
    along the row axis; right-multiplying by M.T applies it along columns.
    """
    w1d = _gauss1d_np()
    idx = np.arange(n)
    d = idx[None, :] - idx[:, None]                      # col - row
    taps = w1d[np.clip(d + PAD, 0, K - 1)]
    return np.where(np.abs(d) <= PAD, taps, 0.0).astype(np.float32)


@functools.lru_cache(maxsize=None)
def _sep_blur_matrices(H, W):
    """bf16 (H,H) vertical band and (W,W) transposed horizontal band."""
    h_m = jnp.asarray(_banded_np(H), dtype=jnp.bfloat16)
    wt_m = jnp.asarray(_banded_np(W).T, dtype=jnp.bfloat16)
    return h_m, wt_m


@functools.lru_cache(maxsize=None)
def _fused_blur_matrix(H, W):
    """bf16 (H*W, H*W) matrix:  y_flat = x_flat @ kron(Hband, Wband)^T."""
    m = np.kron(_banded_np(H), _banded_np(W))
    return jnp.asarray(m.T, dtype=jnp.bfloat16)


def _choose_batch_block(P, row_bytes, target_bytes=1 << 20):
    """Planes per grid step for the fused path.

    Keeps blocks (8,128)-aligned on the sublane axis (multiple of 8 or the
    full extent), prefers >= 2 grid steps (v7x megacore), and targets
    ~0.5-2 MB per streamed block so the ~0.35 us grid-step overhead is
    amortized without crowding VMEM (v7x: 64 MiB physical, 32 MiB scoped).
    """
    cands = [d for d in range(1, P + 1) if P % d == 0 and (d % 8 == 0 or d == P)]
    multi = [d for d in cands if P // d >= 2] or cands
    fitting = [d for d in multi if d * row_bytes <= 2 * target_bytes] or [min(multi)]
    return max(fitting)


# ----------------------------------------------------------------------------
# Kernels.  noise_sigma arrives as a (1,)-f32 SMEM operand (sig_ref) so it is
# never captured as a traced closure constant.  All matmul operands are bf16;
# accumulation is f32 on the MXU.
# ----------------------------------------------------------------------------
def _fused_kernel(sig_ref, m_ref, x_ref, n_ref, o_ref):
    """Small-image path: whole 5x5 blur as one lane-dense matmul per block."""
    x = x_ref[...].astype(jnp.bfloat16)                          # (p_blk, H*W)
    z = jnp.dot(x, m_ref[...], preferred_element_type=jnp.float32)
    o_ref[...] = (z + sig_ref[0] * n_ref[...].astype(jnp.float32)).astype(o_ref.dtype)


def _fused_kernel_prng(sig_ref, seed_ref, m_ref, x_ref, o_ref):
    """Fused path with on-chip N(0,1) noise (no noise HBM stream)."""
    pltpu.prng_seed(seed_ref[0], pl.program_id(0))
    x = x_ref[...].astype(jnp.bfloat16)
    z = jnp.dot(x, m_ref[...], preferred_element_type=jnp.float32)
    noise = pltpu.stateful_normal(z.shape, jnp.float32)
    o_ref[...] = (z + sig_ref[0] * noise).astype(o_ref.dtype)


def _plane_kernel(sig_ref, h_ref, wt_ref, x_ref, n_ref, o_ref):
    """General path: one (H, W) image plane per grid step, two banded matmuls.

    TODO(synk): for very large H on v5e, band-tile the vertical matmul with a
    2*PAD halo instead of the dense (H, H) band to cut zero-MAC work.
    """
    x = x_ref[...].astype(jnp.bfloat16)                                    # (H, W)
    y = jnp.dot(h_ref[...], x, preferred_element_type=jnp.float32)         # vertical
    z = jnp.dot(y.astype(jnp.bfloat16), wt_ref[...],
                preferred_element_type=jnp.float32)                        # horizontal
    o_ref[...] = (z + sig_ref[0] * n_ref[...].astype(jnp.float32)).astype(o_ref.dtype)


def _plane_kernel_prng(sig_ref, seed_ref, h_ref, wt_ref, x_ref, o_ref):
    pltpu.prng_seed(seed_ref[0], pl.program_id(0))
    x = x_ref[...].astype(jnp.bfloat16)
    y = jnp.dot(h_ref[...], x, preferred_element_type=jnp.float32)
    z = jnp.dot(y.astype(jnp.bfloat16), wt_ref[...],
                preferred_element_type=jnp.float32)
    noise = pltpu.stateful_normal(z.shape, jnp.float32)
    o_ref[...] = (z + sig_ref[0] * noise).astype(o_ref.dtype)


# ----------------------------------------------------------------------------
# Wrapper.
# ----------------------------------------------------------------------------
_SMEM_SPEC = pl.BlockSpec(memory_space=pltpu.MemorySpace.SMEM)
_CPARAMS = pltpu.CompilerParams(dimension_semantics=("parallel",))


def operator_plus_noise(x, noise_sigma, *, noise=None, seed=None):
    """y = GaussianBlur5x5(x) + noise_sigma * N(0, 1);  x: (B, C, H, W).

    Exactly one of
      * noise: explicit N(0,1) array, same shape as x (deterministic; used for
        tests / interpret mode), or
      * seed:  int scalar - noise is drawn on-chip with the TPU hardware PRNG,
        removing one full HBM stream,
    must be provided.  Supply a fresh noise/seed per call (see TODO above).
    """
    if (noise is None) == (seed is None):
        raise ValueError("pass exactly one of `noise=` or `seed=`")

    B, C, H, W = x.shape
    P = B * C
    sigma_arr = jnp.asarray([noise_sigma], dtype=jnp.float32)

    # Fused path only while the kron matrix stays small: (H*W)^2 bf16 bytes
    # must leave VMEM headroom (v7x: 64 MiB physical / 32 MiB scoped default).
    fused = (W < 128) and (H * W <= 2048)

    if fused:
        HW = H * W
        x2 = x.reshape(P, HW)                     # free reshape, no transpose
        m = _fused_blur_matrix(H, W)
        p_blk = _choose_batch_block(P, HW * x.dtype.itemsize)
        grid = (P // p_blk,)
        # NOTE: m's index_map is grid-invariant; pl.Buffered(1) could drop its
        # second pipeline buffer for extra VMEM headroom at large H*W.
        m_spec = pl.BlockSpec((HW, HW), lambda i: (0, 0))
        blk_spec = pl.BlockSpec((p_blk, HW), lambda i: (i, 0))
        out_shape = jax.ShapeDtypeStruct((P, HW), x.dtype)
        if noise is not None:
            out = pl.pallas_call(
                _fused_kernel,
                out_shape=out_shape, grid=grid,
                in_specs=[_SMEM_SPEC, m_spec, blk_spec, blk_spec],
                out_specs=blk_spec,
                compiler_params=_CPARAMS,
            )(sigma_arr, m, x2, noise.reshape(P, HW))
        else:
            seed_arr = jnp.asarray([seed], dtype=jnp.int32)
            out = pl.pallas_call(
                _fused_kernel_prng,
                out_shape=out_shape, grid=grid,
                in_specs=[_SMEM_SPEC, _SMEM_SPEC, m_spec, blk_spec],
                out_specs=blk_spec,
                compiler_params=_CPARAMS,
            )(sigma_arr, seed_arr, m, x2)
        return out.reshape(B, C, H, W)

    # General path: one (H, W) plane per grid step (lane-dense once W >= 128).
    x3 = x.reshape(P, H, W)                        # free reshape, no transpose
    h_m, wt_m = _sep_blur_matrices(H, W)
    grid = (P,)
    h_spec = pl.BlockSpec((H, H), lambda p: (0, 0))
    wt_spec = pl.BlockSpec((W, W), lambda p: (0, 0))
    pln_spec = pl.BlockSpec((None, H, W), lambda p: (p, 0, 0))
    out_shape = jax.ShapeDtypeStruct((P, H, W), x.dtype)
    if noise is not None:
        out = pl.pallas_call(
            _plane_kernel,
            out_shape=out_shape, grid=grid,
            in_specs=[_SMEM_SPEC, h_spec, wt_spec, pln_spec, pln_spec],
            out_specs=pln_spec,
            compiler_params=_CPARAMS,
        )(sigma_arr, h_m, wt_m, x3, noise.reshape(P, H, W))
    else:
        seed_arr = jnp.asarray([seed], dtype=jnp.int32)
        out = pl.pallas_call(
            _plane_kernel_prng,
            out_shape=out_shape, grid=grid,
            in_specs=[_SMEM_SPEC, _SMEM_SPEC, h_spec, wt_spec, pln_spec],
            out_specs=pln_spec,
            compiler_params=_CPARAMS,
        )(sigma_arr, seed_arr, h_m, wt_m, x3)
    return out.reshape(B, C, H, W)


# ----------------------------------------------------------------------------
# Reference + demo.
# ----------------------------------------------------------------------------
def _reference(x, noise, sigma):
    """25-tap 'same'-padded blur + sigma * noise, all in f32."""
    _, _, H, W = x.shape
    w1d = jnp.asarray(_gauss1d_np())
    w2d = jnp.outer(w1d, w1d)
    xp = jnp.pad(x, ((0, 0), (0, 0), (PAD, PAD), (PAD, PAD)))
    blur = jnp.zeros_like(x)
    for di in range(K):
        for dj in range(K):
            blur = blur + w2d[di, dj] * xp[:, :, di:di + H, dj:dj + W]
    return blur + jnp.float32(sigma) * noise


if __name__ == "__main__":
    key = jax.random.PRNGKey(0)
    kx, kn, kx2, kn2 = jax.random.split(key, 4)
    noise_sigma = 0.1

    # --- small images -> fused (single-matmul) path --------------------------
    B, C, H, W = 2, 4, 16, 16
    x = jax.random.normal(kx, (B, C, H, W), dtype=jnp.float32)
    # Explicit, deterministic stand-in for torch.randn_like(A_x).
    noise = jax.random.normal(kn, (B, C, H, W), dtype=jnp.float32)
    y = operator_plus_noise(x, noise_sigma, noise=noise)
    jax.block_until_ready(y)

    ref = _reference(x, noise, noise_sigma)
    assert y.shape == x.shape and y.dtype == x.dtype
    assert bool(jnp.all(jnp.isfinite(y)))
    err = float(jnp.max(jnp.abs(y - ref)))
    assert err < 3e-2, err

    # --- wide images -> per-plane (two banded matmuls) path ------------------
    B2, C2, H2, W2 = 1, 2, 16, 128
    x2 = jax.random.normal(kx2, (B2, C2, H2, W2), dtype=jnp.float32)
    n2 = jax.random.normal(kn2, (B2, C2, H2, W2), dtype=jnp.float32)
    y2 = operator_plus_noise(x2, noise_sigma, noise=n2)
    jax.block_until_ready(y2)
    err2 = float(jnp.max(jnp.abs(y2 - _reference(x2, n2, noise_sigma))))
    assert err2 < 3e-2, err2

    print("KERNEL_OK")
</pallas_src>

<mosaic_0001>
module attributes {stable_mosaic.version = 11 : i64} {
  func.func @_fused_kernel(%arg0: i32, %arg1: memref<1xf32, #tpu.memory_space<smem>>, %arg2: memref<256x256xbf16, #tpu.memory_space<vmem>>, %arg3: memref<8x256xf32, #tpu.memory_space<vmem>>, %arg4: memref<8x256xf32, #tpu.memory_space<vmem>>, %arg5: memref<8x256xf32, #tpu.memory_space<vmem>>) attributes {dimension_semantics = [#tpu.dimension_semantics<parallel>], iteration_bounds = array<i64: 1>, scalar_prefetch = 0 : i64, scratch_operands = 0 : i64, tpu.core_type = #tpu.core_type<tc>, window_params = [{transform_indices = @transform_0, window_bounds = array<i64: 1>}, {pipeline_mode = #tpu.pipeline_mode<synchronous>, transform_indices = @transform_1, window_bounds = array<i64: 256, 256>}, {transform_indices = @transform_2, window_bounds = array<i64: 8, 256>}, {transform_indices = @transform_3, window_bounds = array<i64: 8, 256>}, {transform_indices = @transform_4, window_bounds = array<i64: 8, 256>}]} {
    %c0 = arith.constant 0 : index
    %c0_0 = arith.constant 0 : index
    %0 = vector.load %arg3[%c0, %c0_0] : memref<8x256xf32, #tpu.memory_space<vmem>>, vector<8x256xf32>
    %1 = arith.truncf %0 : vector<8x256xf32> to vector<8x256xbf16>
    %c0_1 = arith.constant 0 : index
    %c0_2 = arith.constant 0 : index
    %2 = vector.load %arg2[%c0_1, %c0_2] : memref<256x256xbf16, #tpu.memory_space<vmem>>, vector<256x256xbf16>
    %cst = arith.constant dense<0.000000e+00> : vector<8x256xf32>
    %3 = tpu.matmul %1, %2, %cst {dimension_numbers = #tpu.dot_dimension_numbers<[1], [0], [0], [1], [0, 0, 1, 1], [], []>} : vector<8x256xbf16>, vector<256x256xbf16>, vector<8x256xf32> -> vector<8x256xf32>
    %c0_3 = arith.constant 0 : index
    %4 = memref.load %arg1[%c0_3] : memref<1xf32, #tpu.memory_space<smem>>
    %c0_4 = arith.constant 0 : index
    %c0_5 = arith.constant 0 : index
    %5 = vector.load %arg4[%c0_4, %c0_5] : memref<8x256xf32, #tpu.memory_space<vmem>>, vector<8x256xf32>
    %6 = vector.broadcast %4 : f32 to vector<8x256xf32>
    %7 = arith.mulf %6, %5 : vector<8x256xf32>
    %8 = arith.addf %3, %7 : vector<8x256xf32>
    %c0_6 = arith.constant 0 : index
    %c0_7 = arith.constant 0 : index
    %9 = vector.load %arg5[%c0_6, %c0_7] : memref<8x256xf32, #tpu.memory_space<vmem>>, vector<8x256xf32>
    tpu.vector_store %arg5[%c0_6, %c0_7], %8 {strides = array<i32>} : memref<8x256xf32, #tpu.memory_space<vmem>>, vector<8x256xf32>,
    return
  }
  func.func @transform_0(%arg0: i32) -> i32 {
    %c0_i32 = arith.constant 0 : i32
    %c0_i32_0 = arith.constant 0 : i32
    return %c0_i32 : i32
  }
  func.func @transform_1(%arg0: i32) -> (i32, i32) {
    %c0_i32 = arith.constant 0 : i32
    %c0_i32_0 = arith.constant 0 : i32
    %c0_i32_1 = arith.constant 0 : i32
    return %c0_i32, %c0_i32_0 : i32, i32
  }
  func.func @transform_2(%arg0: i32) -> (i32, i32) {
    %c0_i32 = arith.constant 0 : i32
    %c0_i32_0 = arith.constant 0 : i32
    return %arg0, %c0_i32 : i32, i32
  }
  func.func @transform_3(%arg0: i32) -> (i32, i32) {
    %c0_i32 = arith.constant 0 : i32
    %c0_i32_0 = arith.constant 0 : i32
    return %arg0, %c0_i32 : i32, i32
  }
  func.func @transform_4(%arg0: i32) -> (i32, i32) {
    %c0_i32 = arith.constant 0 : i32
    %c0_i32_0 = arith.constant 0 : i32
    return %arg0, %c0_i32 : i32, i32
  }
}

</mosaic_0001>

<llo_original>
// kernel: tpu_custom_call.1
$region0: #{tpu_custom_call.1}
  #allocation0 [shape = 'u32[]', space=smem, size = 0x4, offset = 0x4, fixed_abs, tag = 'smem constant byte address 0x4 - core index']
  #allocation1 [shape = 'u32[144,128]{1,0:T(1,128)}', space=vmem, size = 0x12000, scoped, tag = 'internal scratch']
  #allocation2 [shape = 'f32[1]{0:T(128)S(6)}', space=smem, size = 0x200, scoped, tag = 'scoped memory for tpu_custom_call.1']
  %s0 = inlined_call_operand.<no memory space> [shape: f32[1], index: 0, kind: input, shape index: {}]
  %s1 = inlined_call_operand.hbm [shape: bf16[256,256], index: 1, kind: input, shape index: {}]
  %s2 = inlined_call_operand.hbm [shape: f32[8,256], index: 2, kind: input, shape index: {}]
  %s3 = inlined_call_operand.hbm [shape: f32[8,256], index: 3, kind: input, shape index: {}]
  %s4 = inlined_call_operand.hbm [shape: f32[8,256], index: 4, kind: output, shape index: {}]
  %s5 = sld [smem:[#allocation0]]
  $region38: #{tpu_custom_call.1} parent=0
    _
  %s7 = ssub.s32 1, %s5
  %s8 = scalar_select 0, %s7, %s5
  %9 = sst [smem:[#allocation2]] %s0
  $region1: #{tpu_custom_call.1} parent=0
    #allocation3 [shape = 'u8[131072]{0}', space=vmem, size = 0x20000, scoped, tag = 'input window, operand 1, single buffered']
    #allocation4 [shape = 's32[1]{0}', space=sflag, size = 0x4, scoped, tag = 'scoped memory for tpu_custom_call.1']
    #allocation5 [shape = 's32[1]{0}', space=sflag, size = 0x4, scoped, tag = 'scoped memory for tpu_custom_call.1']
    #allocation6 [shape = 'u8[8192]{0}', space=vmem, size = 0x2000, scoped, tag = 'input window, operand 2, single buffered']
    #allocation7 [shape = 's32[1]{0}', space=sflag, size = 0x4, scoped, tag = 'scoped memory for tpu_custom_call.1']
    #allocation8 [shape = 'u8[8192]{0}', space=vmem, size = 0x2000, scoped, tag = 'input window, operand 3, single buffered']
    #allocation9 [shape = 'u8[8192]{0}', space=vmem, size = 0x2000, scoped, tag = 'output window, operand 0, single buffered']
    %10 = vsyncpa [#allocation4], 0
    %11 = vsyncpa [#allocation7], 0
    %12 = vsyncpa [#allocation5], 0
    // Predicated region
    $region2: #{tpu_custom_call.1} parent=1 // pred_check
      _
    $region3: #{tpu_custom_call.1} parent=1 // pred_check_branch
      %14 = sbr.rel (0) target = $region5
    $region4: #{tpu_custom_call.1} parent=1 // pred_region
      _
    $region5: #{tpu_custom_call.1} parent=1 // pred_fallthru
      _
    // Predicated region
    $region6: #{tpu_custom_call.1} parent=1 // pred_check
      _
    $region7: #{tpu_custom_call.1} parent=1 // pred_check_branch
      %16 = sbr.rel (0) target = $region9
    $region8: #{tpu_custom_call.1} parent=1 // pred_region
      %s18 = ssub.s32 4096, 4096
      %19 = vsyncadd [#allocation4], %s18
      %s20 = sshll.u32 [#allocation3], 4
      %s21 = int_to_ptr.vmem [resolvable:$true] %s20
      %26 = dma.hbm_to_vmem [thread:$0]  %s1, 4096, %s21, [#allocation4], 128, 128, 8
    $region9: #{tpu_custom_call.1} parent=1 // pred_fallthru
      _
    // Predicated region
    $region10: #{tpu_custom_call.1} parent=1 // pred_check
      _
    $region11: #{tpu_custom_call.1} parent=1 // pred_check_branch
      %28 = sbr.rel (0) target = $region13
    $region12: #{tpu_custom_call.1} parent=1 // pred_region
      %s30 = ssub.s32 256, 256
      %31 = vsyncadd [#allocation7], %s30
      %s33 = sshll.u32 [#allocation6], 4
      %s34 = int_to_ptr.vmem [resolvable:$true] %s33
      %36 = dma.hbm_to_vmem [thread:$0]  %s2, 256, %s34, [#allocation7]
    $region13: #{tpu_custom_call.1} parent=1 // pred_fallthru
      _
    // Predicated region
    $region14: #{tpu_custom_call.1} parent=1 // pred_check
      _
    $region15: #{tpu_custom_call.1} parent=1 // pred_check_branch
      %38 = sbr.rel (0) target = $region17
    $region16: #{tpu_custom_call.1} parent=1 // pred_region
      %s40 = ssub.s32 256, 256
      %41 = vsyncadd [#allocation7], %s40
      %s43 = sshll.u32 [#allocation8], 4
      %s44 = int_to_ptr.vmem [resolvable:$true] %s43
      %46 = dma.hbm_to_vmem [thread:$0]  %s3, 256, %s44, [#allocation7]
    $region17: #{tpu_custom_call.1} parent=1 // pred_fallthru
      _
    // Predicated region
    $region18: #{tpu_custom_call.1} parent=1 // pred_check
      _
    $region19: #{tpu_custom_call.1} parent=1 // pred_check_branch
      %48 = sbr.rel (0) target = $region21
    $region20: #{tpu_custom_call.1} parent=1 // pred_region
      %49 = dma.done [#allocation4], 4096
    $region21: #{tpu_custom_call.1} parent=1 // pred_fallthru
      _
    // Predicated region
    $region22: #{tpu_custom_call.1} parent=1 // pred_check
      _
    $region23: #{tpu_custom_call.1} parent=1 // pred_check_branch
      %51 = sbr.rel (0) target = $region25
    $region24: #{tpu_custom_call.1} parent=1 // pred_region
      %52 = dma.done [#allocation7], 256
    $region25: #{tpu_custom_call.1} parent=1 // pred_fallthru
      _
    // Predicated region
    $region26: #{tpu_custom_call.1} parent=1 // pred_check
      _
    $region27: #{tpu_custom_call.1} parent=1 // pred_check_branch
      %54 = sbr.rel (0) target = $region29
    $region28: #{tpu_custom_call.1} parent=1 // pred_region
      %55 = dma.done [#allocation7], 256
    $region29: #{tpu_custom_call.1} parent=1 // pred_fallthru
      _
    %v56 = vld [vmem:[#allocation6] sm:$0xff]
    %v57 = vld [vmem:[#allocation6 + $0x8] sm:$0xff]
    %v58 = vpack.c.bf16 %v56, %v56
    %v59 = vpack.c.bf16 %v57, %v57
    %v60 = vld [vmem:[#allocation3] sm:$0xff]
    %v61 = vld [vmem:[#allocation3 + $0x8] sm:$0xff]
    %v62 = vld [vmem:[#allocation3 + $0x10] sm:$0xff]
    %v63 = vld [vmem:[#allocation3 + $0x18] sm:$0xff]
    %v64 = vld [vmem:[#allocation3 + $0x20] sm:$0xff]
    %v65 = vld [vmem:[#allocation3 + $0x28] sm:$0xff]
    %v66 = vld [vmem:[#allocation3 + $0x30] sm:$0xff]
    %v67 = vld [vmem:[#allocation3 + $0x38] sm:$0xff]
    %v68 = vld [vmem:[#allocation3 + $0x40] sm:$0xff]
    %v69 = vld [vmem:[#allocation3 + $0x48] sm:$0xff]
    %v70 = vld [vmem:[#allocation3 + $0x50] sm:$0xff]
    %v71 = vld [vmem:[#allocation3 + $0x58] sm:$0xff]
    %v72 = vld [vmem:[#allocation3 + $0x60] sm:$0xff]
    %v73 = vld [vmem:[#allocation3 + $0x68] sm:$0xff]
    %v74 = vld [vmem:[#allocation3 + $0x70] sm:$0xff]
    %v75 = vld [vmem:[#allocation3 + $0x78] sm:$0xff]
    %v76 = vld [vmem:[#allocation3 + $0x80] sm:$0xff]
    %v77 = vld [vmem:[#allocation3 + $0x88] sm:$0xff]
    %v78 = vld [vmem:[#allocation3 + $0x90] sm:$0xff]
    %v79 = vld [vmem:[#allocation3 + $0x98] sm:$0xff]
    %v80 = vld [vmem:[#allocation3 + $0xa0] sm:$0xff]
    %v81 = vld [vmem:[#allocation3 + $0xa8] sm:$0xff]
    %v82 = vld [vmem:[#allocation3 + $0xb0] sm:$0xff]
    %v83 = vld [vmem:[#allocation3 + $0xb8] sm:$0xff]
    %v84 = vld [vmem:[#allocation3 + $0xc0] sm:$0xff]
    %v85 = vld [vmem:[#allocation3 + $0xc8] sm:$0xff]
    %v86 = vld [vmem:[#allocation3 + $0xd0] sm:$0xff]
    %v87 = vld [vmem:[#allocation3 + $0xd8] sm:$0xff]
    %v88 = vld [vmem:[#allocation3 + $0xe0] sm:$0xff]
    %v89 = vld [vmem:[#allocation3 + $0xe8] sm:$0xff]
    %v90 = vld [vmem:[#allocation3 + $0xf0] sm:$0xff]
    %v91 = vld [vmem:[#allocation3 + $0xf8] sm:$0xff]
    %s92 = sld [smem:[#allocation2]]
    %v93 = vld [vmem:[#allocation8] sm:$0xff]
    %v94 = vld [vmem:[#allocation8 + $0x8] sm:$0xff]
    %v95 = vstv %s92
    %v96 = vmul.f32 %v95, %v93
    %v97 = vmul.f32 %v95, %v94
    %v130 = vunpack.c.l.b16 %v60
    %v131 = vunpack.c.h.b16 %v60
    %v132 = vunpack.c.l.b16 %v61
    %v133 = vunpack.c.h.b16 %v61
    %v134 = vunpack.c.l.b16 %v62
    %v135 = vunpack.c.h.b16 %v62
    %v136 = vunpack.c.l.b16 %v63
    %v137 = vunpack.c.h.b16 %v63
    %v138 = vunpack.c.l.b16 %v64
    %v139 = vunpack.c.h.b16 %v64
    %v140 = vunpack.c.l.b16 %v65
    %v141 = vunpack.c.h.b16 %v65
    %v142 = vunpack.c.l.b16 %v66
    %v143 = vunpack.c.h.b16 %v66
    %v144 = vunpack.c.l.b16 %v67
    %v145 = vunpack.c.h.b16 %v67
    %v146 = vunpack.c.l.b16 %v68
    %v147 = vunpack.c.h.b16 %v68
    %v148 = vunpack.c.l.b16 %v69
    %v149 = vunpack.c.h.b16 %v69
    %v150 = vunpack.c.l.b16 %v70
    %v151 = vunpack.c.h.b16 %v70
    %v152 = vunpack.c.l.b16 %v71
    %v153 = vunpack.c.h.b16 %v71
    %v154 = vunpack.c.l.b16 %v72
    %v155 = vunpack.c.h.b16 %v72
    %v156 = vunpack.c.l.b16 %v73
    %v157 = vunpack.c.h.b16 %v73
    %v158 = vunpack.c.l.b16 %v74
    %v159 = vunpack.c.h.b16 %v74
    %v160 = vunpack.c.l.b16 %v75
    %v161 = vunpack.c.h.b16 %v75
    %v162 = vunpack.c.l.b16 %v76
    %v163 = vunpack.c.h.b16 %v76
    %v164 = vunpack.c.l.b16 %v77
    %v165 = vunpack.c.h.b16 %v77
    %v166 = vunpack.c.l.b16 %v78
    %v167 = vunpack.c.h.b16 %v78
    %v168 = vunpack.c.l.b16 %v79
    %v169 = vunpack.c.h.b16 %v79
    %v170 = vunpack.c.l.b16 %v80
    %v171 = vunpack.c.h.b16 %v80
    %v172 = vunpack.c.l.b16 %v81
    %v173 = vunpack.c.h.b16 %v81
    %v174 = vunpack.c.l.b16 %v82
    %v175 = vunpack.c.h.b16 %v82
    %v176 = vunpack.c.l.b16 %v83
    %v177 = vunpack.c.h.b16 %v83
    %v178 = vunpack.c.l.b16 %v84
    %v179 = vunpack.c.h.b16 %v84
    %v180 = vunpack.c.l.b16 %v85
    %v181 = vunpack.c.h.b16 %v85
    %v182 = vunpack.c.l.b16 %v86
    %v183 = vunpack.c.h.b16 %v86
    %v184 = vunpack.c.l.b16 %v87
    %v185 = vunpack.c.h.b16 %v87
    %v186 = vunpack.c.l.b16 %v88
    %v187 = vunpack.c.h.b16 %v88
    %v188 = vunpack.c.l.b16 %v89
    %v189 = vunpack.c.h.b16 %v89
    %v190 = vunpack.c.l.b16 %v90
    %v191 = vunpack.c.h.b16 %v90
    %v192 = vunpack.c.l.b16 %v91
    %v193 = vunpack.c.h.b16 %v91
    %v194 = vpack.c.b16 %v132, %v130
    %v195 = vpack.c.b16 %v133, %v131
    %v196 = vpack.c.b16 %v136, %v134
    %v197 = vpack.c.b16 %v137, %v135
    %v198 = vpack.c.b16 %v140, %v138
    %v199 = vpack.c.b16 %v141, %v139
    %v200 = vpack.c.b16 %v144, %v142
    %v201 = vpack.c.b16 %v145, %v143
    %v202 = vpack.c.b16 %v148, %v146
    %v203 = vpack.c.b16 %v149, %v147
    %v204 = vpack.c.b16 %v152, %v150
    %v205 = vpack.c.b16 %v153, %v151
    %v206 = vpack.c.b16 %v156, %v154
    %v207 = vpack.c.b16 %v157, %v155
    %v208 = vpack.c.b16 %v160, %v158
    %v209 = vpack.c.b16 %v161, %v159
    %v210 = vpack.c.b16 %v164, %v162
    %v211 = vpack.c.b16 %v165, %v163
    %v212 = vpack.c.b16 %v168, %v166
    %v213 = vpack.c.b16 %v169, %v167
    %v214 = vpack.c.b16 %v172, %v170
    %v215 = vpack.c.b16 %v173, %v171
    %v216 = vpack.c.b16 %v176, %v174
    %v217 = vpack.c.b16 %v177, %v175
    %v218 = vpack.c.b16 %v180, %v178
    %v219 = vpack.c.b16 %v181, %v179
    %v220 = vpack.c.b16 %v184, %v182
    %v221 = vpack.c.b16 %v185, %v183
    %v222 = vpack.c.b16 %v188, %v186
    %v223 = vpack.c.b16 %v189, %v187
    %v224 = vpack.c.b16 %v192, %v190
    %v225 = vpack.c.b16 %v193, %v191
    %258 = vmatprep.subr.bf16.mxu0 %v195
    %259 = vmatpush1.bf16.msra.mxu0 %v194
    %260 = vmatprep.subr.bf16.mxu0 %v197
    %261 = vmatpush1.bf16.msra.mxu0 %v196
    %262 = vmatprep.subr.bf16.mxu0 %v199
    %263 = vmatpush1.bf16.msra.mxu0 %v198
    %264 = vmatprep.subr.bf16.mxu0 %v201
    %265 = vmatpush1.bf16.msra.mxu0 %v200
    %266 = vmatprep.subr.bf16.mxu0 %v203
    %267 = vmatpush1.bf16.msra.mxu0 %v202
    %268 = vmatprep.subr.bf16.mxu0 %v205
    %269 = vmatpush1.bf16.msra.mxu0 %v204
    %270 = vmatprep.subr.bf16.mxu0 %v207
    %271 = vmatpush1.bf16.msra.mxu0 %v206
    %272 = vmatprep.subr.bf16.mxu0 %v209
    %273 = vmatpush1.bf16.msra.mxu0 %v208
    %274 = vmatprep.subr.bf16.mxu0 %v211
    %275 = vmatpush1.bf16.msra.mxu0 %v210
    %276 = vmatprep.subr.bf16.mxu0 %v213
    %277 = vmatpush1.bf16.msra.mxu0 %v212
    %278 = vmatprep.subr.bf16.mxu0 %v215
    %279 = vmatpush1.bf16.msra.mxu0 %v214
    %280 = vmatprep.subr.bf16.mxu0 %v217
    %281 = vmatpush1.bf16.msra.mxu0 %v216
    %282 = vmatprep.subr.bf16.mxu0 %v219
    %283 = vmatpush1.bf16.msra.mxu0 %v218
    %284 = vmatprep.subr.bf16.mxu0 %v221
    %285 = vmatpush1.bf16.msra.mxu0 %v220
    %286 = vmatprep.subr.bf16.mxu0 %v223
    %287 = vmatpush1.bf16.msra.mxu0 %v222
    %288 = vmatprep.subr.bf16.mxu0 %v225
    %289 = vmatpush1.bf16.msra.mxu0 %v224
    %290 = vmatprep.mubr.bf16.mxu0 %v59
    %291 = vmatmul.mubr.bf16.gmra.mrb[0].mxu0 %v58
    %v292 = vpop.f32.mrb[0].mxu0
    %v293 = vadd.f32 %v96, %v292
    %v294 = vpop.f32.mrb[0].mxu0
    %v295 = vadd.f32 %v97, %v294
    %v296 = vpop.f32.mrb[0].mxu0
    %v297 = vpop.f32.mrb[0].mxu0
    %298 = vdwg.mxu0
    %299 = vst [vmem:[#allocation9] sm:$0xff] %v293
    %300 = vst [vmem:[#allocation9 + $0x8] sm:$0xff] %v295
    // Predicated region
    $region30: #{tpu_custom_call.1} parent=1 // pred_check
      _
    $region31: #{tpu_custom_call.1} parent=1 // pred_check_branch
      %302 = sbr.rel (0) target = $region33
    $region32: #{tpu_custom_call.1} parent=1 // pred_region
      %s304 = ssub.s32 256, 256
      %305 = vsyncadd [#allocation5], %s304
      %s307 = sshll.u32 [#allocation9], 4
      %s308 = int_to_ptr.vmem [resolvable:$true] %s307
      %310 = dma.vmem_to_hbm [thread:$0]  %s308, 256, %s4, [#allocation5]
    $region33: #{tpu_custom_call.1} parent=1 // pred_fallthru
      _
    // Predicated region
    $region34: #{tpu_custom_call.1} parent=1 // pred_check
      _
    $region35: #{tpu_custom_call.1} parent=1 // pred_check_branch
      %312 = sbr.rel (0) target = $region37
    $region36: #{tpu_custom_call.1} parent=1 // pred_region
      %313 = dma.done [#allocation5], 256
    $region37: #{tpu_custom_call.1} parent=1 // pred_fallthru
      _
    %314 = vsyncpa [#allocation4], 1
    %315 = vsyncpa [#allocation7], 1
    %316 = vsyncpa [#allocation5], 1

</llo_original>
